<compile_context>
chip_gen: v7x
topology: tpu7x:2x2x1
jax: 0.10.0
libtpu: 0.0.40
codegen_flags: <defaults>
</compile_context>

<pallas_src>
import functools
import math

import jax
import jax.numpy as jnp
from jax import lax
from jax.experimental import pallas as pl
from jax.experimental.pallas import tpu as pltpu


def _encoder_kernel(x_ref, wk_ref, bk_ref, favg_ref, out_ref, *, inv_tau, norm_eps):
    # x_ref / out_ref: (bn, C, S) block (bn sequences, lane-dense token axis).
    # wk_ref: (Kd, C); bk_ref: (Kd, 1); favg_ref: (S, S) frame-averaging operator.
    bn = x_ref.shape[0]

    wk = wk_ref[...]                                    # (Kd, C)
    bk = bk_ref[...]                                    # (Kd, 1)
    frame_avg = favg_ref[...]                           # (S, S): 1/HW on same-frame pairs

    for n in range(bn):
        x_t = x_ref[n]                                  # (C, S), token s = t*HW + h*W + w

        # Shared q/k projection (query == key == src): one MXU matmul, f32 accumulation.
        proj_t = lax.dot_general(
            wk, x_t, dimension_numbers=(((1,), (0,)), ((), ())),
            preferred_element_type=jnp.float32) + bk     # (Kd, S)

        # F.normalize (x / max(||x||, 1e-12)) over the key dim; fold 1/tau into q side only.
        inv_norm = lax.rsqrt(jnp.maximum(
            jnp.sum(proj_t * proj_t, axis=0, keepdims=True), 1e-24))        # (1, S)
        qn_t = proj_t * (inv_norm * inv_tau)
        kn_t = proj_t * inv_norm

        # scores[i, j] = <qn[:, i], kn[:, j]> -- contract the Kd axis of both operands.
        scores = lax.dot_general(
            qn_t, kn_t, dimension_numbers=(((0,), (0,)), ((), ())),
            preferred_element_type=jnp.float32)          # (S, S)

        # Softmax over keys with a constant shift: kn (and qn*tau) columns are unit vectors,
        # so scores <= 1/tau and the diagonal is exactly 1/tau -> shifted denominator >= 1.
        # Shift-invariance makes this identical to the row-max form, minus one XLU reduce.
        p = jnp.exp(scores - inv_tau)
        aff = p * pl.reciprocal(jnp.sum(p, axis=-1, keepdims=True), approx=True)

        # Attention output (value == src) + residual, still in (C, S):
        # (aff @ xs)^T = xs^T @ aff^T  ==  dot_general contracting the token axes.
        y_t = x_t + lax.dot_general(
            x_t, aff, dimension_numbers=(((1,), (1,)), ((), ())),
            preferred_element_type=jnp.float32)           # (C, S)

        # InstanceNorm2d (no affine, biased variance): per (frame, channel) stats over the HW
        # spatial positions, computed densely with the frame-averaging operator so the result
        # is a single lane-dense (C, S) slab written with one store.
        mu = lax.dot_general(y_t, frame_avg, dimension_numbers=(((1,), (0,)), ((), ())),
                             preferred_element_type=jnp.float32)             # (C, S)
        d = y_t - mu
        var = lax.dot_general(d * d, frame_avg, dimension_numbers=(((1,), (0,)), ((), ())),
                              preferred_element_type=jnp.float32)            # (C, S)
        out_ref[n] = (d * lax.rsqrt(var + norm_eps)).astype(out_ref.dtype)


def _sequences_per_grid_step(num_sequences):
    """Batch-fusion policy: single-TC chips (v5e/v6e) fuse the whole batch into one grid step;
    multi-TC chips (v7x / unknown) keep one sequence per step so "parallel" uses both cores."""
    try:
        kind = jax.devices()[0].device_kind.lower()
    except Exception:
        return 1
    if any(tag in kind for tag in ("v5 lite", "v5e", "v6 lite", "v6e")):
        return num_sequences
    return 1


def transformer_encoder_forward(src, wk_weight, wk_bias, tau=1.0 / 30, norm_eps=1e-5,
                                sequences_per_step=None):
    """src: (T, N, C, H, W) f32.  wk_weight: (Kd, C) (PyTorch Linear layout).  wk_bias: (Kd,)."""
    T, N, C, H, W = src.shape
    HW = H * W
    S = T * HW
    Kd = wk_weight.shape[0]

    # Wrapper-side layout plumbing (cheap XLA reshape/transpose): present each sequence as one
    # lane-dense (C, S) slab with token index s = t*HW + h*W + w, and take the result back the
    # same way.  This keeps the kernel body free of transposes/concats and masked stores.
    x = jnp.transpose(src.reshape(T, N, C, HW), (1, 2, 0, 3)).reshape(N, C, S)
    bk = wk_bias.reshape(Kd, 1).astype(jnp.float32)

    # Constant frame-averaging operator: 1/HW where tokens share a frame, else 0.
    frame_ids = jnp.arange(S, dtype=jnp.int32) // HW
    frame_avg = (frame_ids[:, None] == frame_ids[None, :]).astype(jnp.float32) * (1.0 / HW)

    if sequences_per_step is None:
        sequences_per_step = _sequences_per_grid_step(N)
    bn = max(1, min(int(sequences_per_step), N))
    if N % bn:
        bn = 1
    grid = (N // bn,)

    kernel = functools.partial(_encoder_kernel, inv_tau=1.0 / tau, norm_eps=norm_eps)

    out = pl.pallas_call(
        kernel,
        out_shape=jax.ShapeDtypeStruct((N, C, S), jnp.float32),
        grid_spec=pltpu.PrefetchScalarGridSpec(
            num_scalar_prefetch=0,
            grid=grid,
            in_specs=[
                pl.BlockSpec((bn, C, S), lambda n: (n, 0, 0)),
                pl.BlockSpec((Kd, C), lambda n: (0, 0)),
                pl.BlockSpec((Kd, 1), lambda n: (0, 0)),
                pl.BlockSpec((S, S), lambda n: (0, 0)),
            ],
            out_specs=pl.BlockSpec((bn, C, S), lambda n: (n, 0, 0)),
        ),
        compiler_params=pltpu.CompilerParams(
            dimension_semantics=("parallel",),
        ),
    )(x, wk_weight.astype(jnp.float32), bk, frame_avg)

    # (N, C, S) -> (T, N, C, H, W)
    return jnp.transpose(out.reshape(N, C, T, HW), (2, 0, 1, 3)).reshape(T, N, C, H, W)


def reference_forward(src, wk_weight, wk_bias, tau=1.0 / 30, norm_eps=1e-5):
    """Pure-JAX reference mirroring the PyTorch TransformerEncoder.forward step by step."""
    T, N, C, H, W = src.shape
    HW = H * W
    # (T, N, C, H, W) -> (T*H*W, N, C)
    s = jnp.transpose(src.reshape(T, N, C, HW), (0, 3, 1, 2)).reshape(T * HW, N, C)
    # Attention (query = key = value = s): shared WK projection, L2 normalize, /tau, softmax.
    proj = jnp.einsum("snc,kc->snk", s, wk_weight) + wk_bias
    pn = proj / jnp.maximum(jnp.linalg.norm(proj, axis=-1, keepdims=True), 1e-12)
    w_q = jnp.transpose(pn, (1, 0, 2))   # (N, S, Kd)
    w_k = jnp.transpose(pn, (1, 2, 0))   # (N, Kd, S)
    w_v = jnp.transpose(s, (1, 0, 2))    # (N, S, C)
    aff = jax.nn.softmax(jnp.einsum("nqk,nks->nqs", w_q, w_k) / tau, axis=-1)
    attn = jnp.transpose(jnp.einsum("nqs,nsc->nqc", aff, w_v), (1, 0, 2))         # (S, N, C)
    y = s + attn
    # InstanceNorm2d over spatial per (frame, sequence, channel); output layout (T, N, C, H, W).
    z = jnp.transpose(y.reshape(T, H, W, N, C), (0, 3, 4, 1, 2)).reshape(T * N, C, HW)
    mu = jnp.mean(z, axis=-1, keepdims=True)
    var = jnp.mean((z - mu) ** 2, axis=-1, keepdims=True)
    zn = (z - mu) / jnp.sqrt(var + norm_eps)
    return zn.reshape(T, N, C, H, W)


if __name__ == "__main__":
    # Small shapes consistent with the module: feature_dim=C=32, key_dim=16,
    # num_frames=2, num_sequences=2, 4x4 spatial -> sequence length S = 32.
    T, N, C, H, W = 2, 2, 32, 4, 4
    Kd = 16
    tau = 1.0 / 30

    root = jax.random.PRNGKey(0)
    ks, kw, kb = jax.random.split(root, 3)
    src = jax.random.normal(ks, (T, N, C, H, W), dtype=jnp.float32)
    # Deterministic parameter init: weight ~ N(0, sqrt(2/out_features)), small random bias.
    wk_weight = jax.random.normal(kw, (Kd, C), dtype=jnp.float32) * math.sqrt(2.0 / Kd)
    wk_bias = jax.random.normal(kb, (Kd,), dtype=jnp.float32) * 0.1

    out = transformer_encoder_forward(src, wk_weight, wk_bias, tau=tau)
    out = jax.block_until_ready(out)

    ref = reference_forward(src, wk_weight, wk_bias, tau=tau)
    assert out.shape == (T, N, C, H, W)
    max_err = float(jnp.max(jnp.abs(out - ref)))
    assert jnp.allclose(out, ref, atol=5e-3, rtol=5e-3), (
        f"mismatch vs reference (max abs err {max_err})")

    print("KERNEL_OK")
</pallas_src>

<mosaic_0001>
module attributes {stable_mosaic.version = 11 : i64} {
  func.func @_encoder_kernel(%arg0: i32, %arg1: memref<1x32x32xf32, #tpu.memory_space<vmem>>, %arg2: memref<16x32xf32, #tpu.memory_space<vmem>>, %arg3: memref<16x1xf32, #tpu.memory_space<vmem>>, %arg4: memref<32x32xf32, #tpu.memory_space<vmem>>, %arg5: memref<1x32x32xf32, #tpu.memory_space<vmem>>) attributes {dimension_semantics = [#tpu.dimension_semantics<parallel>], iteration_bounds = array<i64: 2>, scalar_prefetch = 0 : i64, scratch_operands = 0 : i64, tpu.core_type = #tpu.core_type<tc>, window_params = [{transform_indices = @transform_0, window_bounds = array<i64: 1, 32, 32>}, {pipeline_mode = #tpu.pipeline_mode<synchronous>, transform_indices = @transform_1, window_bounds = array<i64: 16, 32>}, {pipeline_mode = #tpu.pipeline_mode<synchronous>, transform_indices = @transform_2, window_bounds = array<i64: 16, 1>}, {pipeline_mode = #tpu.pipeline_mode<synchronous>, transform_indices = @transform_3, window_bounds = array<i64: 32, 32>}, {transform_indices = @transform_4, window_bounds = array<i64: 1, 32, 32>}]} {
    %c0 = arith.constant 0 : index
    %c0_0 = arith.constant 0 : index
    %0 = vector.load %arg2[%c0, %c0_0] : memref<16x32xf32, #tpu.memory_space<vmem>>, vector<16x32xf32>
    %c0_1 = arith.constant 0 : index
    %c0_2 = arith.constant 0 : index
    %1 = vector.load %arg3[%c0_1, %c0_2] : memref<16x1xf32, #tpu.memory_space<vmem>>, vector<16x1xf32>
    %c0_3 = arith.constant 0 : index
    %c0_4 = arith.constant 0 : index
    %2 = vector.load %arg4[%c0_3, %c0_4] : memref<32x32xf32, #tpu.memory_space<vmem>>, vector<32x32xf32>
    %c0_5 = arith.constant 0 : index
    %c0_6 = arith.constant 0 : index
    %c0_7 = arith.constant 0 : index
    %3 = vector.load %arg1[%c0_5, %c0_6, %c0_7] : memref<1x32x32xf32, #tpu.memory_space<vmem>>, vector<1x32x32xf32>
    %4 = vector.shape_cast %3 : vector<1x32x32xf32> to vector<32x32xf32>
    %cst = arith.constant dense<0.000000e+00> : vector<16x32xf32>
    %5 = tpu.matmul %0, %4, %cst {dimension_numbers = #tpu.dot_dimension_numbers<[1], [0], [0], [1], [0, 0, 1, 1], [], []>} : vector<16x32xf32>, vector<32x32xf32>, vector<16x32xf32> -> vector<16x32xf32>
    %6 = vector.broadcast %1 : vector<16x1xf32> to vector<16x32xf32>
    %7 = arith.addf %5, %6 : vector<16x32xf32>
    %8 = arith.mulf %7, %7 : vector<16x32xf32>
    %cst_8 = arith.constant dense<0.000000e+00> : vector<32xf32>
    %9 = vector.multi_reduction <add>, %8, %cst_8 [0] : vector<16x32xf32> to vector<32xf32>
    %10 = vector.shape_cast %9 : vector<32xf32> to vector<1x32xf32>
    %cst_9 = arith.constant 1.000000e-24 : f32
    %11 = vector.broadcast %cst_9 : f32 to vector<1x32xf32>
    %12 = arith.maximumf %10, %11 : vector<1x32xf32>
    %13 = math.rsqrt %12 : vector<1x32xf32>
    %cst_10 = arith.constant 3.000000e+01 : f32
    %14 = vector.broadcast %cst_10 : f32 to vector<1x32xf32>
    %15 = arith.mulf %13, %14 : vector<1x32xf32>
    %16 = vector.broadcast %15 : vector<1x32xf32> to vector<16x32xf32>
    %17 = arith.mulf %7, %16 : vector<16x32xf32>
    %18 = vector.broadcast %13 : vector<1x32xf32> to vector<16x32xf32>
    %19 = arith.mulf %7, %18 : vector<16x32xf32>
    %cst_11 = arith.constant dense<0.000000e+00> : vector<32x32xf32>
    %20 = tpu.matmul %17, %19, %cst_11 {dimension_numbers = #tpu.dot_dimension_numbers<[0], [0], [1], [1], [0, 1, 1, 1], [], []>} : vector<16x32xf32>, vector<16x32xf32>, vector<32x32xf32> -> vector<32x32xf32>
    %cst_12 = arith.constant 3.000000e+01 : f32
    %21 = vector.broadcast %cst_12 : f32 to vector<32x32xf32>
    %22 = arith.subf %20, %21 : vector<32x32xf32>
    %23 = math.exp %22 : vector<32x32xf32>
    %cst_13 = arith.constant dense<0.000000e+00> : vector<32xf32>
    %24 = vector.multi_reduction <add>, %23, %cst_13 [1] : vector<32x32xf32> to vector<32xf32>
    %25 = vector.shape_cast %24 : vector<32xf32> to vector<32x1xf32>
    %26 = tpu.reciprocal %25 {approx = true} : vector<32x1xf32> -> vector<32x1xf32>
    %27 = vector.broadcast %26 : vector<32x1xf32> to vector<32x32xf32>
    %28 = arith.mulf %23, %27 : vector<32x32xf32>
    %cst_14 = arith.constant dense<0.000000e+00> : vector<32x32xf32>
    %29 = tpu.matmul %4, %28, %cst_14 {dimension_numbers = #tpu.dot_dimension_numbers<[1], [1], [0], [0], [0, 0, 1, 0], [], []>} : vector<32x32xf32>, vector<32x32xf32>, vector<32x32xf32> -> vector<32x32xf32>
    %30 = arith.addf %4, %29 : vector<32x32xf32>
    %cst_15 = arith.constant dense<0.000000e+00> : vector<32x32xf32>
    %31 = tpu.matmul %30, %2, %cst_15 {dimension_numbers = #tpu.dot_dimension_numbers<[1], [0], [0], [1], [0, 0, 1, 1], [], []>} : vector<32x32xf32>, vector<32x32xf32>, vector<32x32xf32> -> vector<32x32xf32>
    %32 = arith.subf %30, %31 : vector<32x32xf32>
    %33 = arith.mulf %32, %32 : vector<32x32xf32>
    %cst_16 = arith.constant dense<0.000000e+00> : vector<32x32xf32>
    %34 = tpu.matmul %33, %2, %cst_16 {dimension_numbers = #tpu.dot_dimension_numbers<[1], [0], [0], [1], [0, 0, 1, 1], [], []>} : vector<32x32xf32>, vector<32x32xf32>, vector<32x32xf32> -> vector<32x32xf32>
    %cst_17 = arith.constant 9.99999974E-6 : f32
    %35 = vector.broadcast %cst_17 : f32 to vector<32x32xf32>
    %36 = arith.addf %34, %35 : vector<32x32xf32>
    %37 = math.rsqrt %36 : vector<32x32xf32>
    %38 = arith.mulf %32, %37 : vector<32x32xf32>
    %c0_18 = arith.constant 0 : index
    %c0_19 = arith.constant 0 : index
    %c0_20 = arith.constant 0 : index
    %39 = vector.load %arg5[%c0_18, %c0_19, %c0_20] : memref<1x32x32xf32, #tpu.memory_space<vmem>>, vector<1x32x32xf32>
    %40 = vector.shape_cast %39 : vector<1x32x32xf32> to vector<32x32xf32>
    %41 = vector.shape_cast %38 : vector<32x32xf32> to vector<1x32x32xf32>
    tpu.vector_store %arg5[%c0_18, %c0_19, %c0_20], %41 {strides = array<i32>} : memref<1x32x32xf32, #tpu.memory_space<vmem>>, vector<1x32x32xf32>,
    return
  }
  func.func @transform_0(%arg0: i32) -> (i32, i32, i32) {
    %c0_i32 = arith.constant 0 : i32
    %c0_i32_0 = arith.constant 0 : i32
    %c0_i32_1 = arith.constant 0 : i32
    return %arg0, %c0_i32, %c0_i32_0 : i32, i32, i32
  }
  func.func @transform_1(%arg0: i32) -> (i32, i32) {
    %c0_i32 = arith.constant 0 : i32
    %c0_i32_0 = arith.constant 0 : i32
    %c0_i32_1 = arith.constant 0 : i32
    return %c0_i32, %c0_i32_0 : i32, i32
  }
  func.func @transform_2(%arg0: i32) -> (i32, i32) {
    %c0_i32 = arith.constant 0 : i32
    %c0_i32_0 = arith.constant 0 : i32
    %c0_i32_1 = arith.constant 0 : i32
    return %c0_i32, %c0_i32_0 : i32, i32
  }
  func.func @transform_3(%arg0: i32) -> (i32, i32) {
    %c0_i32 = arith.constant 0 : i32
    %c0_i32_0 = arith.constant 0 : i32
    %c0_i32_1 = arith.constant 0 : i32
    return %c0_i32, %c0_i32_0 : i32, i32
  }
  func.func @transform_4(%arg0: i32) -> (i32, i32, i32) {
    %c0_i32 = arith.constant 0 : i32
    %c0_i32_0 = arith.constant 0 : i32
    %c0_i32_1 = arith.constant 0 : i32
    return %arg0, %c0_i32, %c0_i32_0 : i32, i32, i32
  }
}

</mosaic_0001>

<llo_original>
// kernel: tpu_custom_call.1
$region0: #{tpu_custom_call.1}
  #allocation0 [shape = 'u32[]', space=smem, size = 0x4, offset = 0x4, fixed_abs, tag = 'smem constant byte address 0x4 - core index']
  #allocation1 [shape = 'u32[144,128]{1,0:T(1,128)}', space=vmem, size = 0x12000, scoped, tag = 'internal scratch']
  %s0 = inlined_call_operand.hbm [shape: f32[2,32,32], index: 0, kind: input, shape index: {}]
  %s1 = inlined_call_operand.vmem [shape: f32[16,32], index: 1, kind: input, shape index: {}]
  %s2 = inlined_call_operand.vmem [shape: f32[16,1], index: 2, kind: input, shape index: {}]
  %s3 = inlined_call_operand.hbm [shape: f32[32,32], index: 3, kind: input, shape index: {}]
  %s4 = inlined_call_operand.hbm [shape: f32[2,32,32], index: 4, kind: output, shape index: {}]
  %s5 = sld [smem:[#allocation0]]
  $region57: #{tpu_custom_call.1} parent=0
    _
  %s7 = ssub.s32 1, %s5
  %s8 = scalar_select 0, %s7, %s5
  $region1: #{tpu_custom_call.1} parent=0
    #allocation2 [shape = 'u8[32768]{0}', space=vmem, size = 0x8000, scoped, tag = 'input window, operand 0']
    #allocation3 [shape = 's32[2]{0}', space=sflag, size = 0x8, scoped, tag = 'scoped memory for tpu_custom_call.1']
    #allocation4 [shape = 's32[2]{0}', space=sflag, size = 0x8, scoped, tag = 'scoped memory for tpu_custom_call.1']
    #allocation5 [shape = 'u8[16384]{0}', space=vmem, size = 0x4000, scoped, tag = 'input window, operand 3, single buffered']
    #allocation6 [shape = 's32[1]{0}', space=sflag, size = 0x4, scoped, tag = 'scoped memory for tpu_custom_call.1']
    #allocation7 [shape = 'u8[32768]{0}', space=vmem, size = 0x8000, scoped, tag = 'output window, operand 0']
    %9 = vsyncpa [#allocation3], 0
    %s10 = scalar_lea.sflag [#allocation3], 1
    %11 = vsyncpa %s10, 0
    %12 = vsyncpa [#allocation6], 0
    %13 = vsyncpa [#allocation4], 0
    %s14 = scalar_lea.sflag [#allocation4], 1
    %15 = vsyncpa %s14, 0
    loop: start=0, step=1, limit=4
    $region2: #{tpu_custom_call.1} parent=1 // loop_pre_header
      _
    $region3: #{tpu_custom_call.1} parent=1 // loop_header
      %s17 = sphi 0, %s21
      %p18 = scmp.ge.s32.totalorder %s17, 4
      %s27 = sphi 0, %s29
      %s30 = sphi 0, %s27
      %s31 = sphi 0, %s30
      %s47 = sphi 0, %s31
      %s51 = sphi 0, %s51
      %s53 = sphi 0, %s51
      %s54 = sphi 0, %s53
      %s68 = sphi 0, %s54
      %s72 = sphi 0, %s72
      %s74 = sphi 0, %s72
      %s75 = sphi 0, %s74
      %s89 = sphi 0, %s75
      %s93 = sphi 0, %s93
      %s95 = sphi 0, %s93
      %s96 = sphi 0, %s95
      %s110 = sphi 0, %s96
      %s116 = sphi 0, %s118
      %s119 = sphi 0, %s116
      %s120 = sphi 0, %s119
      %s136 = sphi 0, %s120
    $region4: #{tpu_custom_call.1} parent=1 // loop_header_branch
      %20 = sbr.rel (%p18) target = $region8
    $region5: #{tpu_custom_call.1} parent=1 // loop_body
      %s22 = ssub.s32 %s17, 1
      %s23 = ssub.s32 %s17, 2
      %s24 = sadd.s32 %s17, 1
      %s25 = ssub.s32 %s17, %s24
      %p26 = scmp.eq.s32.totalorder %s25, 0
      %s28 = sadd.s32 %s27, 1
      %s29 = scalar_select %p26, %s27, %s28
      %p32 = pneg %p26
      %p33 = scmp.eq.s32.totalorder %s17, 1
      %p34 = por %p32, %p33
      %p35 = scmp.ne.s32.totalorder %s27, %s30
      %p36 = scmp.eq.s32.totalorder %s17, 0
      %p37 = por %p35, %p36
      %p38 = scmp.ne.s32.totalorder %s27, %s30
      %p39 = scmp.eq.s32.totalorder %s22, 1
      %p40 = por %p38, %p39
      %p41 = scmp.ne.s32.totalorder %s30, %s31
      %p42 = scmp.eq.s32.totalorder %s22, 0
      %p43 = por %p41, %p42
      %p44 = scmp.ne.s32.totalorder %s30, %s31
      %p45 = scmp.eq.s32.totalorder %s23, 1
      %p46 = por %p44, %p45
      %p48 = scmp.ne.s32.totalorder %s31, %s47
      %p49 = scmp.eq.s32.totalorder %s23, 0
      %p50 = por %p48, %p49
      %s52 = sadd.s32 %s51, 1
      %p55 = scmp.eq.s32.totalorder %s17, 1
      %p56 = scmp.ne.s32.totalorder %s51, %s53
      %p57 = scmp.eq.s32.totalorder %s17, 0
      %p58 = por %p56, %p57
      %p59 = scmp.ne.s32.totalorder %s51, %s53
      %p60 = scmp.eq.s32.totalorder %s22, 1
      %p61 = por %p59, %p60
      %p62 = scmp.ne.s32.totalorder %s53, %s54
      %p63 = scmp.eq.s32.totalorder %s22, 0
      %p64 = por %p62, %p63
      %p65 = scmp.ne.s32.totalorder %s53, %s54
      %p66 = scmp.eq.s32.totalorder %s23, 1
      %p67 = por %p65, %p66
      %p69 = scmp.ne.s32.totalorder %s54, %s68
      %p70 = scmp.eq.s32.totalorder %s23, 0
      %p71 = por %p69, %p70
      %s73 = sadd.s32 %s72, 1
      %p76 = scmp.eq.s32.totalorder %s17, 1
      %p77 = scmp.ne.s32.totalorder %s72, %s74
      %p78 = scmp.eq.s32.totalorder %s17, 0
      %p79 = por %p77, %p78
      %p80 = scmp.ne.s32.totalorder %s72, %s74
      %p81 = scmp.eq.s32.totalorder %s22, 1
      %p82 = por %p80, %p81
      %p83 = scmp.ne.s32.totalorder %s74, %s75
      %p84 = scmp.eq.s32.totalorder %s22, 0
      %p85 = por %p83, %p84
      %p86 = scmp.ne.s32.totalorder %s74, %s75
      %p87 = scmp.eq.s32.totalorder %s23, 1
      %p88 = por %p86, %p87
      %p90 = scmp.ne.s32.totalorder %s75, %s89
      %p91 = scmp.eq.s32.totalorder %s23, 0
      %p92 = por %p90, %p91
      %s94 = sadd.s32 %s93, 1
      %p97 = scmp.eq.s32.totalorder %s17, 1
      %p98 = scmp.ne.s32.totalorder %s93, %s95
      %p99 = scmp.eq.s32.totalorder %s17, 0
      %p100 = por %p98, %p99
      %p101 = scmp.ne.s32.totalorder %s93, %s95
      %p102 = scmp.eq.s32.totalorder %s22, 1
      %p103 = por %p101, %p102
      %p104 = scmp.ne.s32.totalorder %s95, %s96
      %p105 = scmp.eq.s32.totalorder %s22, 0
      %p106 = por %p104, %p105
      %p107 = scmp.ne.s32.totalorder %s95, %s96
      %p108 = scmp.eq.s32.totalorder %s23, 1
      %p109 = por %p107, %p108
      %p111 = scmp.ne.s32.totalorder %s96, %s110
      %p112 = scmp.eq.s32.totalorder %s23, 0
      %p113 = por %p111, %p112
      %s114 = ssub.s32 %s17, %s24
      %p115 = scmp.eq.s32.totalorder %s114, 0
      %s117 = sadd.s32 %s116, 1
      %s118 = scalar_select %p115, %s116, %s117
      %p121 = pneg %p115
      %p122 = scmp.eq.s32.totalorder %s17, 1
      %p123 = por %p121, %p122
      %p124 = scmp.ne.s32.totalorder %s116, %s119
      %p125 = scmp.eq.s32.totalorder %s17, 0
      %p126 = por %p124, %p125
      %p127 = scmp.ne.s32.totalorder %s116, %s119
      %p128 = scmp.eq.s32.totalorder %s22, 1
      %p129 = por %p127, %p128
      %p130 = scmp.ne.s32.totalorder %s119, %s120
      %p131 = scmp.eq.s32.totalorder %s22, 0
      %p132 = por %p130, %p131
      %p133 = scmp.ne.s32.totalorder %s119, %s120
      %p134 = scmp.eq.s32.totalorder %s23, 1
      %p135 = por %p133, %p134
      %p137 = scmp.ne.s32.totalorder %s120, %s136
      %p138 = scmp.eq.s32.totalorder %s23, 0
      %p139 = por %p137, %p138
      %p140 = scmp.le.s32.totalorder 1, %s17
      %p141 = scmp.lt.s32.totalorder %s17, 3
      %p142 = pnand %p140, %p141
      %p143 = pneg %p142
      // Predicated region
      $region9: #{tpu_custom_call.1} parent=5 // pred_check
        _
      $region10: #{tpu_custom_call.1} parent=5 // pred_check_branch
        %145 = sbr.rel (%p142) target = $region12
      $region11: #{tpu_custom_call.1} parent=5 // pred_region
        %s146 = ssub.s32 %s17, 1
        // Predicated region
        $region13: #{tpu_custom_call.1} parent=11 // pred_check
          %p147 = pneg %p64
        $region14: #{tpu_custom_call.1} parent=11 // pred_check_branch
          %149 = sbr.rel (%p147) target = $region16
        $region15: #{tpu_custom_call.1} parent=11 // pred_region
          _
        $region16: #{tpu_custom_call.1} parent=11 // pred_fallthru
          _
        // Predicated region
        $region17: #{tpu_custom_call.1} parent=11 // pred_check
          %p150 = pneg %p85
        $region18: #{tpu_custom_call.1} parent=11 // pred_check_branch
          %152 = sbr.rel (%p150) target = $region20
        $region19: #{tpu_custom_call.1} parent=11 // pred_region
          _
        $region20: #{tpu_custom_call.1} parent=11 // pred_fallthru
          _
        // Predicated region
        $region21: #{tpu_custom_call.1} parent=11 // pred_check
          %p153 = pneg %p106
        $region22: #{tpu_custom_call.1} parent=11 // pred_check_branch
          %155 = sbr.rel (%p153) target = $region24
        $region23: #{tpu_custom_call.1} parent=11 // pred_region
          %s157 = ssub.s32 512, 512
          %158 = vsyncadd [#allocation6], %s157
          %s159 = sshll.u32 [#allocation5], 4
          %s160 = int_to_ptr.vmem [resolvable:$true] %s159
          %165 = dma.hbm_to_vmem [thread:$0]  %s3, 512, %s160, [#allocation6], 128, 128, 8
        $region24: #{tpu_custom_call.1} parent=11 // pred_fallthru
          _
      $region12: #{tpu_custom_call.1} parent=5 // pred_fallthru
        _
      %p166 = scmp.lt.s32.totalorder %s17, 2
      // Predicated region
      $region25: #{tpu_custom_call.1} parent=5 // pred_check
        %p167 = pneg %p166
      $region26: #{tpu_custom_call.1} parent=5 // pred_check_branch
        %169 = sbr.rel (%p167) target = $region28
      $region27: #{tpu_custom_call.1} parent=5 // pred_region
        // Predicated region
        $region29: #{tpu_custom_call.1} parent=27 // pred_check
          %p170 = pneg %p37
        $region30: #{tpu_custom_call.1} parent=27 // pred_check_branch
          %172 = sbr.rel (%p170) target = $region32
        $region31: #{tpu_custom_call.1} parent=27 // pred_region
          %s173 = sand.u32 %s27, 1
          %s174 = scalar_lea.sflag [#allocation3], %s173
          %s175 = sand.u32 %s27, 1
          %s176 = smul.addr %s175, 32
          %s177 = scalar_lea.vmem [#allocation2], %s176
          %s179 = ssub.s32 512, 512
          %180 = vsyncadd %s174, %s179
          %s181 = smul.addr %s17, 4
          %s182 = smul.addr %s181, 128
          %s183 = scalar_lea.hbm %s0, %s182
          %s184 = sshll.u32 %s177, 4
          %s185 = int_to_ptr.vmem [resolvable:$true] %s184
          %190 = dma.hbm_to_vmem [thread:$0]  %s183, 512, %s185, %s174, 128, 128, 8
        $region32: #{tpu_custom_call.1} parent=27 // pred_fallthru
          _
      $region28: #{tpu_custom_call.1} parent=5 // pred_fallthru
        _
      %p191 = scmp.le.s32.totalorder 1, %s17
      %p192 = scmp.lt.s32.totalorder %s17, 3
      %p193 = pnand %p191, %p192
      %p194 = pneg %p193
      // Predicated region
      $region33: #{tpu_custom_call.1} parent=5 // pred_check
        _
      $region34: #{tpu_custom_call.1} parent=5 // pred_check_branch
        %196 = sbr.rel (%p193) target = $region36
      $region35: #{tpu_custom_call.1} parent=5 // pred_region
        %s197 = ssub.s32 %s17, 1
        %s198 = sand.u32 %s30, 1
        %s199 = scalar_lea.sflag [#allocation3], %s198
        %s200 = sand.u32 %s30, 1
        %s201 = smul.addr %s200, 32
        %s202 = scalar_lea.vmem [#allocation2], %s201
        // Predicated region
        $region37: #{tpu_custom_call.1} parent=35 // pred_check
          %p203 = pneg %p43
        $region38: #{tpu_custom_call.1} parent=35 // pred_check_branch
          %205 = sbr.rel (%p203) target = $region40
        $region39: #{tpu_custom_call.1} parent=35 // pred_region
          %206 = dma.done %s199, 512
        $region40: #{tpu_custom_call.1} parent=35 // pred_fallthru
          _
        // Predicated region
        $region41: #{tpu_custom_call.1} parent=35 // pred_check
          %p207 = pneg %p106
        $region42: #{tpu_custom_call.1} parent=35 // pred_check_branch
          %209 = sbr.rel (%p207) target = $region44
        $region43: #{tpu_custom_call.1} parent=35 // pred_region
          %210 = dma.done [#allocation6], 512
        $region44: #{tpu_custom_call.1} parent=35 // pred_fallthru
          _
        %s211 = sand.u32 %s30, 1
        %s212 = scalar_lea.sflag [#allocation3], %s211
        %s213 = sand.u32 %s30, 1
        %s214 = smul.addr %s213, 32
        %s215 = scalar_lea.vmem [#allocation2], %s214
        %p216 = pneg %p43
        %p217 = pneg %p40
        %p218 = pneg %p64
        %p219 = pneg %p61
        %p220 = pneg %p85
        %p221 = pneg %p82
        %p222 = pneg %p106
        %p223 = pneg %p103
        %p224 = pneg %p132
        %p225 = pneg %p129
        %s226 = sand.u32 %s119, 1
        %s227 = scalar_lea.sflag [#allocation4], %s226
        %s228 = sand.u32 %s119, 1
        %s229 = smul.addr %s228, 32
        %s230 = scalar_lea.vmem [#allocation7], %s229
        %v231 = vld [vmem:[%s1] sm:$0xff]
        %v232 = vld [vmem:[%s1 + $0x8] sm:$0xff]
        %v233 = vld [vmem:[%s2] sm:$0xff]
        %v234 = vld [vmem:[%s2 + $0x8] sm:$0xff]
        %v235 = vld [vmem:[#allocation5] sm:$0xff]
        %v236 = vld [vmem:[#allocation5 + $0x8] sm:$0xff]
        %v237 = vld [vmem:[#allocation5 + $0x10] sm:$0xff]
        %v238 = vld [vmem:[#allocation5 + $0x18] sm:$0xff]
        %v239 = vld [vmem:[%s202] sm:$0xff]
        %v240 = vld [vmem:[%s202 + $0x8] sm:$0xff]
        %v241 = vld [vmem:[%s202 + $0x10] sm:$0xff]
        %v242 = vld [vmem:[%s202 + $0x18] sm:$0xff]
        %244 = vset.pattern.permute.xlu0 0
        %245 = vperm.xlu0 %244, %v233
        %v246 = vpop.permute.xlu0 %245
        %249 = vset.pattern.permute.xlu0 0
        %250 = vperm.xlu0 %249, %v234
        %v251 = vpop.permute.xlu0 %250
        %vm253 = vcmask 261120
        %v255 = vsel %vm253, %v231, 0
        %v258 = vsel %vm253, %v232, 0
        %260 = vmatprep.subr.mxu0 0.0
        %261 = vmatpush1.msra.mxu0 %v239
        %262 = vmatprep.subr.mxu0 0.0
        %263 = vmatpush1.msra.mxu0 %v240
        %264 = vmatprep.subr.mxu0 0.0
        %265 = vmatpush1.msra.mxu0 %v241
        %266 = vmatprep.subr.mxu0 0.0
        %267 = vmatpush1.msra.mxu0 %v242
        %268 = vmatprep.subr.mxu0 0.0
        %269 = vmatpush1.msra.mxu0 0.0
        %270 = vmatprep.subr.mxu0 0.0
        %271 = vmatpush1.msra.mxu0 0.0
        %272 = vmatprep.subr.mxu0 0.0
        %273 = vmatpush1.msra.mxu0 0.0
        %274 = vmatprep.subr.mxu0 0.0
        %275 = vmatpush1.msra.mxu0 0.0
        %276 = vmatprep.subr.mxu0 0.0
        %277 = vmatpush1.msra.mxu0 0.0
        %278 = vmatprep.subr.mxu0 0.0
        %279 = vmatpush1.msra.mxu0 0.0
        %280 = vmatprep.subr.mxu0 0.0
        %281 = vmatpush1.msra.mxu0 0.0
        %282 = vmatprep.subr.mxu0 0.0
        %283 = vmatpush1.msra.mxu0 0.0
        %284 = vmatprep.subr.mxu0 0.0
        %285 = vmatpush1.msra.mxu0 0.0
        %286 = vmatprep.subr.mxu0 0.0
        %287 = vmatpush1.msra.mxu0 0.0
        %288 = vmatprep.subr.mxu0 0.0
        %289 = vmatpush1.msra.mxu0 0.0
        %290 = vmatprep.subr.mxu0 0.0
        %291 = vmatpush1.msra.mxu0 0.0
        %292 = vmatprep.subr.mxu0 0.0
        %293 = vmatpush1.msra.mxu0 0.0
        %294 = vmatprep.subr.mxu0 0.0
        %295 = vmatpush1.msra.mxu0 0.0
        %296 = vmatprep.subr.mxu0 0.0
        %297 = vmatpush1.msra.mxu0 0.0
        %298 = vmatprep.subr.mxu0 0.0
        %299 = vmatpush1.msra.mxu0 0.0
        %300 = vmatprep.subr.mxu0 0.0
        %301 = vmatpush1.msra.mxu0 0.0
        %302 = vmatprep.subr.mxu0 0.0
        %303 = vmatpush1.msra.mxu0 0.0
        %304 = vmatprep.subr.mxu0 0.0
        %305 = vmatpush1.msra.mxu0 0.0
        %306 = vmatprep.subr.mxu0 0.0
        %307 = vmatpush1.msra.mxu0 0.0
        %308 = vmatprep.subr.mxu0 0.0
        %309 = vmatpush1.msra.mxu0 0.0
        %310 = vmatprep.subr.mxu0 0.0
        %311 = vmatpush1.msra.mxu0 0.0
        %312 = vmatprep.subr.mxu0 0.0
        %313 = vmatpush1.msra.mxu0 0.0
        %314 = vmatprep.subr.mxu0 0.0
        %315 = vmatpush1.msra.mxu0 0.0
        %316 = vmatprep.subr.mxu0 0.0
        %317 = vmatpush1.msra.mxu0 0.0
        %318 = vmatprep.subr.mxu0 0.0
        %319 = vmatpush1.msra.mxu0 0.0
        %320 = vmatprep.subr.mxu0 0.0
        %321 = vmatpush1.msra.mxu0 0.0
        %322 = vmatprep.subr.mxu0 0.0
        %323 = vmatpush1.msra.mxu0 0.0
        %324 = vmatprep.mubr.f32.mxu0 0.0
        %325 = vmatmul.mubr.f32.gmra.mrb[0].mxu0 %v255
        %v326 = vpop.f32.mrb[0].mxu0
        %v327 = vadd.f32 %v246, %v326
        %v328 = vpop.f32.mrb[0].mxu0
        %329 = vmatprep.mubr.f32.mxu0 0.0
        %330 = vmatmul.mubr.f32.gmra.mrb[0].mxu0 %v258
        %v331 = vpop.f32.mrb[0].mxu0
        %v332 = vadd.f32 %v251, %v331
        %v333 = vpop.f32.mrb[0].mxu0
        %334 = vdwg.mxu0
        %v335 = vmul.f32 %v327, %v327
        %v336 = vmul.f32 %v332, %v332
        %v337 = vsel %vm253, %v335, 0.0
        %v338 = vsel %vm253, %v336, 0.0
        %v339 = vadd.f32 %v337, %v338
        %v340 = vrot.slane %v339, 4
        %v341 = vadd.f32 %v339, %v340
        %v342 = vrot.slane %v341, 2
        %v343 = vadd.f32 %v341, %v342
        %v344 = vrot.slane %v343, 1
        %v345 = vadd.f32 %v343, %v344
        %v346 = vmax.f32 %v345, 1e-24
        %v347 = vrsqrt.pop %v346
        %v348 = vmul.f32 %v347, 30.0
        %v349 = vmul.f32 %v327, %v348
        %v350 = vmul.f32 %v332, %v348
        %v351 = vmul.f32 %v327, %v347
        %v352 = vmul.f32 %v332, %v347
        %353 = vxpose.xlu0.b32.start [1/16] %v349, 128
        %354 = vxpose.xlu0.b32.cont [2/16] %v350, 128
        %355 = vxpose.xlu0.b32.cont [3/16] 0.0, 128
        %356 = vxpose.xlu0.b32.cont [4/16] 0.0, 128
        %357 = vxpose.xlu0.b32.cont [5/16] 0.0, 128
        %358 = vxpose.xlu0.b32.cont [6/16] 0.0, 128
        %359 = vxpose.xlu0.b32.cont [7/16] 0.0, 128
        %360 = vxpose.xlu0.b32.cont [8/16] 0.0, 128
        %361 = vxpose.xlu0.b32.cont [9/16] 0.0, 128
        %362 = vxpose.xlu0.b32.cont [10/16] 0.0, 128
        %363 = vxpose.xlu0.b32.cont [11/16] 0.0, 128
        %364 = vxpose.xlu0.b32.cont [12/16] 0.0, 128
        %365 = vxpose.xlu0.b32.cont [13/16] 0.0, 128
        %366 = vxpose.xlu0.b32.cont [14/16] 0.0, 128
        %367 = vxpose.xlu0.b32.cont [15/16] 0.0, 128
        %368 = vxpose.xlu0.b32.end [16/16] 0.0, 128
        %v369 = vpop.trf.xlu0
        %v370 = vpop.trf.xlu0
        %v371 = vpop.trf.xlu0
        %v372 = vpop.trf.xlu0
        %v373 = vpop.trf.xlu0
        %v374 = vpop.trf.xlu0
        %v375 = vpop.trf.xlu0
        %v376 = vpop.trf.xlu0
        %v377 = vpop.trf.xlu0
        %v378 = vpop.trf.xlu0
        %v379 = vpop.trf.xlu0
        %v380 = vpop.trf.xlu0
        %v381 = vpop.trf.xlu0
        %v382 = vpop.trf.xlu0
        %v383 = vpop.trf.xlu0
        %v384 = vpop.trf.xlu0
        %vm385 = vcmask 130048
        %v387 = vsel %vm385, %v369, 0
        %v390 = vsel %vm385, %v370, 0
        %v393 = vsel %vm385, %v371, 0
        %v396 = vsel %vm385, %v372, 0
        %398 = vmatprep.subr.mxu0 0.0
        %399 = vmatpush1.msra.mxu0 %v351
        %400 = vmatprep.subr.mxu0 0.0
        %401 = vmatpush1.msra.mxu0 %v352
        %402 = vmatprep.subr.mxu0 0.0
        %403 = vmatpush1.msra.mxu0 0.0
        %404 = vmatprep.subr.mxu0 0.0
        %405 = vmatpush1.msra.mxu0 0.0
        %406 = vmatprep.subr.mxu0 0.0
        %407 = vmatpush1.msra.mxu0 0.0
        %408 = vmatprep.subr.mxu0 0.0
        %409 = vmatpush1.msra.mxu0 0.0
        %410 = vmatprep.subr.mxu0 0.0
        %411 = vmatpush1.msra.mxu0 0.0
        %412 = vmatprep.subr.mxu0 0.0
        %413 = vmatpush1.msra.mxu0 0.0
        %414 = vmatprep.subr.mxu0 0.0
        %415 = vmatpush1.msra.mxu0 0.0
        %416 = vmatprep.subr.mxu0 0.0
        %417 = vmatpush1.msra.mxu0 0.0
        %418 = vmatprep.subr.mxu0 0.0
        %419 = vmatpush1.msra.mxu0 0.0
        %420 = vmatprep.subr.mxu0 0.0
        %421 = vmatpush1.msra.mxu0 0.0
        %422 = vmatprep.subr.mxu0 0.0
        %423 = vmatpush1.msra.mxu0 0.0
        %424 = vmatprep.subr.mxu0 0.0
        %425 = vmatpush1.msra.mxu0 0.0
        %426 = vmatprep.subr.mxu0 0.0
        %427 = vmatpush1.msra.mxu0 0.0
        %428 = vmatprep.subr.mxu0 0.0
        %429 = vmatpush1.msra.mxu0 0.0
        %430 = vmatprep.subr.mxu0 0.0
        %431 = vmatpush1.msra.mxu0 0.0
        %432 = vmatprep.subr.mxu0 0.0
        %433 = vmatpush1.msra.mxu0 0.0
        %434 = vmatprep.subr.mxu0 0.0
        %435 = vmatpush1.msra.mxu0 0.0
        %436 = vmatprep.subr.mxu0 0.0
        %437 = vmatpush1.msra.mxu0 0.0
        %438 = vmatprep.subr.mxu0 0.0
        %439 = vmatpush1.msra.mxu0 0.0
        %440 = vmatprep.subr.mxu0 0.0
        %441 = vmatpush1.msra.mxu0 0.0
        %442 = vmatprep.subr.mxu0 0.0
        %443 = vmatpush1.msra.mxu0 0.0
        %444 = vmatprep.subr.mxu0 0.0
        %445 = vmatpush1.msra.mxu0 0.0
        %446 = vmatprep.subr.mxu0 0.0
        %447 = vmatpush1.msra.mxu0 0.0
        %448 = vmatprep.subr.mxu0 0.0
        %449 = vmatpush1.msra.mxu0 0.0
        %450 = vmatprep.subr.mxu0 0.0
        %451 = vmatpush1.msra.mxu0 0.0
        %452 = vmatprep.subr.mxu0 0.0
        %453 = vmatpush1.msra.mxu0 0.0
        %454 = vmatprep.subr.mxu0 0.0
        %455 = vmatpush1.msra.mxu0 0.0
        %456 = vmatprep.subr.mxu0 0.0
        %457 = vmatpush1.msra.mxu0 0.0
        %458 = vmatprep.subr.mxu0 0.0
        %459 = vmatpush1.msra.mxu0 0.0
        %460 = vmatprep.subr.mxu0 0.0
        %461 = vmatpush1.msra.mxu0 0.0
        %462 = vmatprep.mubr.f32.mxu0 0.0
        %463 = vmatmul.mubr.f32.gmra.mrb[0].mxu0 %v387
        %v464 = vpop.f32.mrb[0].mxu0
        %v465 = vadd.f32 0.0, %v464
        %v466 = vpop.f32.mrb[0].mxu0
        %467 = vmatprep.mubr.f32.mxu0 0.0
        %468 = vmatmul.mubr.f32.gmra.mrb[0].mxu0 %v390
        %v469 = vpop.f32.mrb[0].mxu0
        %v470 = vadd.f32 0.0, %v469
        %v471 = vpop.f32.mrb[0].mxu0
        %472 = vmatprep.mubr.f32.mxu0 0.0
        %473 = vmatmul.mubr.f32.gmra.mrb[0].mxu0 %v393
        %v474 = vpop.f32.mrb[0].mxu0
        %v475 = vadd.f32 0.0, %v474
        %v476 = vpop.f32.mrb[0].mxu0
        %477 = vmatprep.mubr.f32.mxu0 0.0
        %478 = vmatmul.mubr.f32.gmra.mrb[0].mxu0 %v396
        %v479 = vpop.f32.mrb[0].mxu0
        %v480 = vadd.f32 0.0, %v479
        %v481 = vpop.f32.mrb[0].mxu0
        %482 = vdwg.mxu0
        %v483 = vsub.f32 %v465, 30.0
        %v484 = vsub.f32 %v470, 30.0
        %v485 = vsub.f32 %v475, 30.0
        %v486 = vsub.f32 %v480, 30.0
        %v487 = vmul.f32 %v483, 1.442695
        %v488 = vpow.pop %v487
        %v489 = vmul.f32 %v484, 1.442695
        %v490 = vpow.pop %v489
        %v491 = vmul.f32 %v485, 1.442695
        %v492 = vpow.pop %v491
        %v493 = vmul.f32 %v486, 1.442695
        %v494 = vpow.pop %v493
        %v495 = vsel %vm253, %v488, 0.0
        %496 = vadd.xlane.f32.xlu0 %v495
        %v497 = vpop.xlane.xlu0 %496
        %v498 = vsel %vm253, %v490, 0.0
        %499 = vadd.xlane.f32.xlu0 %v498
        %v500 = vpop.xlane.xlu0 %499
        %v501 = vsel %vm253, %v492, 0.0
        %502 = vadd.xlane.f32.xlu0 %v501
        %v503 = vpop.xlane.xlu0 %502
        %v504 = vsel %vm253, %v494, 0.0
        %505 = vadd.xlane.f32.xlu0 %v504
        %v506 = vpop.xlane.xlu0 %505
        %v507 = vrcp.pop %v497
        %v508 = vrcp.pop %v500
        %v509 = vrcp.pop %v503
        %v510 = vrcp.pop %v506
        %v511 = vmul.f32 %v488, %v507
        %v512 = vmul.f32 %v490, %v508
        %v513 = vmul.f32 %v492, %v509
        %v514 = vmul.f32 %v494, %v510
        %v516 = vsel %vm253, %v239, 0
        %v519 = vsel %vm253, %v240, 0
        %v522 = vsel %vm253, %v241, 0
        %v525 = vsel %vm253, %v242, 0
        %v528 = vsel %vm253, %v511, 0
        %v531 = vsel %vm253, %v512, 0
        %v534 = vsel %vm253, %v513, 0
        %v537 = vsel %vm253, %v514, 0
        %539 = vmatprep.subr.mxu0 0.0
        %540 = vmatpush1.xpose.msra.mxu0 %v528
        %541 = vmatprep.subr.mxu0 0.0
        %542 = vmatpush1.xpose.msra.mxu0 %v531
        %543 = vmatprep.subr.mxu0 0.0
        %544 = vmatpush1.xpose.msra.mxu0 %v534
        %545 = vmatprep.subr.mxu0 0.0
        %546 = vmatpush1.xpose.msra.mxu0 %v537
        %547 = vmatprep.subr.mxu0 0.0
        %548 = vmatpush1.xpose.msra.mxu0 0.0
        %549 = vmatprep.subr.mxu0 0.0
        %550 = vmatpush1.xpose.msra.mxu0 0.0
        %551 = vmatprep.subr.mxu0 0.0
        %552 = vmatpush1.xpose.msra.mxu0 0.0
        %553 = vmatprep.subr.mxu0 0.0
        %554 = vmatpush1.xpose.msra.mxu0 0.0
        %555 = vmatprep.subr.mxu0 0.0
        %556 = vmatpush1.xpose.msra.mxu0 0.0
        %557 = vmatprep.subr.mxu0 0.0
        %558 = vmatpush1.xpose.msra.mxu0 0.0
        %559 = vmatprep.subr.mxu0 0.0
        %560 = vmatpush1.xpose.msra.mxu0 0.0
        %561 = vmatprep.subr.mxu0 0.0
        %562 = vmatpush1.xpose.msra.mxu0 0.0
        %563 = vmatprep.subr.mxu0 0.0
        %564 = vmatpush1.xpose.msra.mxu0 0.0
        %565 = vmatprep.subr.mxu0 0.0
        %566 = vmatpush1.xpose.msra.mxu0 0.0
        %567 = vmatprep.subr.mxu0 0.0
        %568 = vmatpush1.xpose.msra.mxu0 0.0
        %569 = vmatprep.subr.mxu0 0.0
        %570 = vmatpush1.xpose.msra.mxu0 0.0
        %571 = vmatprep.subr.mxu0 0.0
        %572 = vmatpush1.xpose.msra.mxu0 0.0
        %573 = vmatprep.subr.mxu0 0.0
        %574 = vmatpush1.xpose.msra.mxu0 0.0
        %575 = vmatprep.subr.mxu0 0.0
        %576 = vmatpush1.xpose.msra.mxu0 0.0
        %577 = vmatprep.subr.mxu0 0.0
        %578 = vmatpush1.xpose.msra.mxu0 0.0
        %579 = vmatprep.subr.mxu0 0.0
        %580 = vmatpush1.xpose.msra.mxu0 0.0
        %581 = vmatprep.subr.mxu0 0.0
        %582 = vmatpush1.xpose.msra.mxu0 0.0
        %583 = vmatprep.subr.mxu0 0.0
        %584 = vmatpush1.xpose.msra.mxu0 0.0
        %585 = vmatprep.subr.mxu0 0.0
        %586 = vmatpush1.xpose.msra.mxu0 0.0
        %587 = vmatprep.subr.mxu0 0.0
        %588 = vmatpush1.xpose.msra.mxu0 0.0
        %589 = vmatprep.subr.mxu0 0.0
        %590 = vmatpush1.xpose.msra.mxu0 0.0
        %591 = vmatprep.subr.mxu0 0.0
        %592 = vmatpush1.xpose.msra.mxu0 0.0
        %593 = vmatprep.subr.mxu0 0.0
        %594 = vmatpush1.xpose.msra.mxu0 0.0
        %595 = vmatprep.subr.mxu0 0.0
        %596 = vmatpush1.xpose.msra.mxu0 0.0
        %597 = vmatprep.subr.mxu0 0.0
        %598 = vmatpush1.xpose.msra.mxu0 0.0
        %599 = vmatprep.subr.mxu0 0.0
        %600 = vmatpush1.xpose.msra.mxu0 0.0
        %601 = vmatprep.subr.mxu0 0.0
        %602 = vmatpush1.xpose.msra.mxu0 0.0
        %603 = vmatprep.mubr.f32.mxu0 0.0
        %604 = vmatmul.mubr.f32.gmra.mrb[0].mxu0 %v516
        %v605 = vpop.f32.mrb[0].mxu0
        %v606 = vadd.f32 0.0, %v605
        %v607 = vpop.f32.mrb[0].mxu0
        %608 = vmatprep.mubr.f32.mxu0 0.0
        %609 = vmatmul.mubr.f32.gmra.mrb[0].mxu0 %v519
        %v610 = vpop.f32.mrb[0].mxu0
        %v611 = vadd.f32 0.0, %v610
        %v612 = vpop.f32.mrb[0].mxu0
        %613 = vmatprep.mubr.f32.mxu0 0.0
        %614 = vmatmul.mubr.f32.gmra.mrb[0].mxu0 %v522
        %v615 = vpop.f32.mrb[0].mxu0
        %v616 = vadd.f32 0.0, %v615
        %v617 = vpop.f32.mrb[0].mxu0
        %618 = vmatprep.mubr.f32.mxu0 0.0
        %619 = vmatmul.mubr.f32.gmra.mrb[0].mxu0 %v525
        %v620 = vpop.f32.mrb[0].mxu0
        %v621 = vadd.f32 0.0, %v620
        %v622 = vpop.f32.mrb[0].mxu0
        %623 = vdwg.mxu0
        %v624 = vadd.f32 %v239, %v606
        %v625 = vadd.f32 %v240, %v611
        %v626 = vadd.f32 %v241, %v616
        %v627 = vadd.f32 %v242, %v621
        %v629 = vsel %vm253, %v624, 0
        %v632 = vsel %vm253, %v625, 0
        %v635 = vsel %vm253, %v626, 0
        %v638 = vsel %vm253, %v627, 0
        %640 = vmatprep.subr.mxu0 0.0
        %641 = vmatpush1.msra.mxu0 %v235
        %642 = vmatprep.subr.mxu0 0.0
        %643 = vmatpush1.msra.mxu0 %v236
        %644 = vmatprep.subr.mxu0 0.0
        %645 = vmatpush1.msra.mxu0 %v237
        %646 = vmatprep.subr.mxu0 0.0
        %647 = vmatpush1.msra.mxu0 %v238
        %648 = vmatprep.subr.mxu0 0.0
        %649 = vmatpush1.msra.mxu0 0.0
        %650 = vmatprep.subr.mxu0 0.0
        %651 = vmatpush1.msra.mxu0 0.0
        %652 = vmatprep.subr.mxu0 0.0
        %653 = vmatpush1.msra.mxu0 0.0
        %654 = vmatprep.subr.mxu0 0.0
        %655 = vmatpush1.msra.mxu0 0.0
        %656 = vmatprep.subr.mxu0 0.0
        %657 = vmatpush1.msra.mxu0 0.0
        %658 = vmatprep.subr.mxu0 0.0
        %659 = vmatpush1.msra.mxu0 0.0
        %660 = vmatprep.subr.mxu0 0.0
        %661 = vmatpush1.msra.mxu0 0.0
        %662 = vmatprep.subr.mxu0 0.0
        %663 = vmatpush1.msra.mxu0 0.0
        %664 = vmatprep.subr.mxu0 0.0
        %665 = vmatpush1.msra.mxu0 0.0
        %666 = vmatprep.subr.mxu0 0.0
        %667 = vmatpush1.msra.mxu0 0.0
        %668 = vmatprep.subr.mxu0 0.0
        %669 = vmatpush1.msra.mxu0 0.0
        %670 = vmatprep.subr.mxu0 0.0
        %671 = vmatpush1.msra.mxu0 0.0
        %672 = vmatprep.subr.mxu0 0.0
        %673 = vmatpush1.msra.mxu0 0.0
        %674 = vmatprep.subr.mxu0 0.0
        %675 = vmatpush1.msra.mxu0 0.0
        %676 = vmatprep.subr.mxu0 0.0
        %677 = vmatpush1.msra.mxu0 0.0
        %678 = vmatprep.subr.mxu0 0.0
        %679 = vmatpush1.msra.mxu0 0.0
        %680 = vmatprep.subr.mxu0 0.0
        %681 = vmatpush1.msra.mxu0 0.0
        %682 = vmatprep.subr.mxu0 0.0
        %683 = vmatpush1.msra.mxu0 0.0
        %684 = vmatprep.subr.mxu0 0.0
        %685 = vmatpush1.msra.mxu0 0.0
        %686 = vmatprep.subr.mxu0 0.0
        %687 = vmatpush1.msra.mxu0 0.0
        %688 = vmatprep.subr.mxu0 0.0
        %689 = vmatpush1.msra.mxu0 0.0
        %690 = vmatprep.subr.mxu0 0.0
        %691 = vmatpush1.msra.mxu0 0.0
        %692 = vmatprep.subr.mxu0 0.0
        %693 = vmatpush1.msra.mxu0 0.0
        %694 = vmatprep.subr.mxu0 0.0
        %695 = vmatpush1.msra.mxu0 0.0
        %696 = vmatprep.subr.mxu0 0.0
        %697 = vmatpush1.msra.mxu0 0.0
        %698 = vmatprep.subr.mxu0 0.0
        %699 = vmatpush1.msra.mxu0 0.0
        %700 = vmatprep.subr.mxu0 0.0
        %701 = vmatpush1.msra.mxu0 0.0
        %702 = vmatprep.subr.mxu0 0.0
        %703 = vmatpush1.msra.mxu0 0.0
        %704 = vmatprep.mubr.f32.mxu0 0.0
        %705 = vmatmul.mubr.f32.gmra.mrb[0].mxu0 %v629
        %v706 = vpop.f32.mrb[0].mxu0
        %v707 = vadd.f32 0.0, %v706
        %v708 = vpop.f32.mrb[0].mxu0
        %709 = vmatprep.mubr.f32.mxu0 0.0
        %710 = vmatmul.mubr.f32.gmra.mrb[0].mxu0 %v632
        %v711 = vpop.f32.mrb[0].mxu0
        %v712 = vadd.f32 0.0, %v711
        %v713 = vpop.f32.mrb[0].mxu0
        %714 = vmatprep.mubr.f32.mxu0 0.0
        %715 = vmatmul.mubr.f32.gmra.mrb[0].mxu0 %v635
        %v716 = vpop.f32.mrb[0].mxu0
        %v717 = vadd.f32 0.0, %v716
        %v718 = vpop.f32.mrb[0].mxu0
        %719 = vmatprep.mubr.f32.mxu0 0.0
        %720 = vmatmul.mubr.f32.gmra.mrb[0].mxu0 %v638
        %v721 = vpop.f32.mrb[0].mxu0
        %v722 = vadd.f32 0.0, %v721
        %v723 = vpop.f32.mrb[0].mxu0
        %724 = vdwg.mxu0
        %v725 = vsub.f32 %v624, %v707
        %v726 = vsub.f32 %v625, %v712
        %v727 = vsub.f32 %v626, %v717
        %v728 = vsub.f32 %v627, %v722
        %v729 = vmul.f32 %v725, %v725
        %v730 = vmul.f32 %v726, %v726
        %v731 = vmul.f32 %v727, %v727
        %v732 = vmul.f32 %v728, %v728
        %v734 = vsel %vm253, %v729, 0
        %v737 = vsel %vm253, %v730, 0
        %v740 = vsel %vm253, %v731, 0
        %v743 = vsel %vm253, %v732, 0
        %745 = vmatprep.subr.mxu0 0.0
        %746 = vmatpush1.msra.mxu0 %v235
        %747 = vmatprep.subr.mxu0 0.0
        %748 = vmatpush1.msra.mxu0 %v236
        %749 = vmatprep.subr.mxu0 0.0
        %750 = vmatpush1.msra.mxu0 %v237
        %751 = vmatprep.subr.mxu0 0.0
        %752 = vmatpush1.msra.mxu0 %v238
        %753 = vmatprep.subr.mxu0 0.0
        %754 = vmatpush1.msra.mxu0 0.0
        %755 = vmatprep.subr.mxu0 0.0
        %756 = vmatpush1.msra.mxu0 0.0
        %757 = vmatprep.subr.mxu0 0.0
        %758 = vmatpush1.msra.mxu0 0.0
        %759 = vmatprep.subr.mxu0 0.0
        %760 = vmatpush1.msra.mxu0 0.0
        %761 = vmatprep.subr.mxu0 0.0
        %762 = vmatpush1.msra.mxu0 0.0
        %763 = vmatprep.subr.mxu0 0.0
        %764 = vmatpush1.msra.mxu0 0.0
        %765 = vmatprep.subr.mxu0 0.0
        %766 = vmatpush1.msra.mxu0 0.0
        %767 = vmatprep.subr.mxu0 0.0
        %768 = vmatpush1.msra.mxu0 0.0
        %769 = vmatprep.subr.mxu0 0.0
        %770 = vmatpush1.msra.mxu0 0.0
        %771 = vmatprep.subr.mxu0 0.0
        %772 = vmatpush1.msra.mxu0 0.0
        %773 = vmatprep.subr.mxu0 0.0
        %774 = vmatpush1.msra.mxu0 0.0
        %775 = vmatprep.subr.mxu0 0.0
        %776 = vmatpush1.msra.mxu0 0.0
        %777 = vmatprep.subr.mxu0 0.0
        %778 = vmatpush1.msra.mxu0 0.0
        %779 = vmatprep.subr.mxu0 0.0
        %780 = vmatpush1.msra.mxu0 0.0
        %781 = vmatprep.subr.mxu0 0.0
        %782 = vmatpush1.msra.mxu0 0.0
        %783 = vmatprep.subr.mxu0 0.0
        %784 = vmatpush1.msra.mxu0 0.0
        %785 = vmatprep.subr.mxu0 0.0
        %786 = vmatpush1.msra.mxu0 0.0
        %787 = vmatprep.subr.mxu0 0.0
        %788 = vmatpush1.msra.mxu0 0.0
        %789 = vmatprep.subr.mxu0 0.0
        %790 = vmatpush1.msra.mxu0 0.0
        %791 = vmatprep.subr.mxu0 0.0
        %792 = vmatpush1.msra.mxu0 0.0
        %793 = vmatprep.subr.mxu0 0.0
        %794 = vmatpush1.msra.mxu0 0.0
        %795 = vmatprep.subr.mxu0 0.0
        %796 = vmatpush1.msra.mxu0 0.0
        %797 = vmatprep.subr.mxu0 0.0
        %798 = vmatpush1.msra.mxu0 0.0
        %799 = vmatprep.subr.mxu0 0.0
        %800 = vmatpush1.msra.mxu0 0.0
        %801 = vmatprep.subr.mxu0 0.0
        %802 = vmatpush1.msra.mxu0 0.0
        %803 = vmatprep.subr.mxu0 0.0
        %804 = vmatpush1.msra.mxu0 0.0
        %805 = vmatprep.subr.mxu0 0.0
        %806 = vmatpush1.msra.mxu0 0.0
        %807 = vmatprep.subr.mxu0 0.0
        %808 = vmatpush1.msra.mxu0 0.0
        %809 = vmatprep.mubr.f32.mxu0 0.0
        %810 = vmatmul.mubr.f32.gmra.mrb[0].mxu0 %v734
        %v811 = vpop.f32.mrb[0].mxu0
        %v812 = vadd.f32 1e-05, %v811
        %v813 = vpop.f32.mrb[0].mxu0
        %814 = vmatprep.mubr.f32.mxu0 0.0
        %815 = vmatmul.mubr.f32.gmra.mrb[0].mxu0 %v737
        %v816 = vpop.f32.mrb[0].mxu0
        %v817 = vadd.f32 1e-05, %v816
        %v818 = vpop.f32.mrb[0].mxu0
        %819 = vmatprep.mubr.f32.mxu0 0.0
        %820 = vmatmul.mubr.f32.gmra.mrb[0].mxu0 %v740
        %v821 = vpop.f32.mrb[0].mxu0
        %v822 = vadd.f32 1e-05, %v821
        %v823 = vpop.f32.mrb[0].mxu0
        %824 = vmatprep.mubr.f32.mxu0 0.0
        %825 = vmatmul.mubr.f32.gmra.mrb[0].mxu0 %v743
        %v826 = vpop.f32.mrb[0].mxu0
        %v827 = vadd.f32 1e-05, %v826
        %v828 = vpop.f32.mrb[0].mxu0
        %829 = vdwg.mxu0
        %v830 = vrsqrt.pop %v812
        %v831 = vrsqrt.pop %v817
        %v832 = vrsqrt.pop %v822
        %v833 = vrsqrt.pop %v827
        %v834 = vmul.f32 %v725, %v830
        %v835 = vmul.f32 %v726, %v831
        %v836 = vmul.f32 %v727, %v832
        %v837 = vmul.f32 %v728, %v833
        %838 = vst.msk [vmem:[%s230] sm:$0xff] %vm253, %v834
        %839 = vst.msk [vmem:[%s230 + $0x8] sm:$0xff] %vm253, %v835
        %840 = vst.msk [vmem:[%s230 + $0x10] sm:$0xff] %vm253, %v836
        %841 = vst.msk [vmem:[%s230 + $0x18] sm:$0xff] %vm253, %v837
        %s842 = sand.u32 %s119, 1
        %s843 = scalar_lea.sflag [#allocation4], %s842
        %s844 = sand.u32 %s119, 1
        %s845 = smul.addr %s844, 32
        %s846 = scalar_lea.vmem [#allocation7], %s845
        // Predicated region
        $region45: #{tpu_custom_call.1} parent=35 // pred_check
          %p847 = pneg %p129
        $region46: #{tpu_custom_call.1} parent=35 // pred_check_branch
          %849 = sbr.rel (%p847) target = $region48
        $region47: #{tpu_custom_call.1} parent=35 // pred_region
          %s851 = ssub.s32 512, 512
          %852 = vsyncadd %s843, %s851
          %s853 = smul.addr %s22, 4
          %s854 = smul.addr %s853, 128
          %s855 = scalar_lea.hbm %s4, %s854
          %s856 = sshll.u32 %s846, 4
          %s857 = int_to_ptr.vmem [resolvable:$true] %s856
          %862 = dma.vmem_to_hbm [thread:$0]  %s857, 512, %s855, %s843, 128, 128, 8
        $region48: #{tpu_custom_call.1} parent=35 // pred_fallthru
          _
      $region36: #{tpu_custom_call.1} parent=5 // pred_fallthru
        _
      %p863 = scmp.le.s32.totalorder 2, %s17
      // Predicated region
      $region49: #{tpu_custom_call.1} parent=5 // pred_check
        %p864 = pneg %p863
      $region50: #{tpu_custom_call.1} parent=5 // pred_check_branch
        %866 = sbr.rel (%p864) target = $region52
      $region51: #{tpu_custom_call.1} parent=5 // pred_region
        %s867 = ssub.s32 %s17, 2
        // Predicated region
        $region53: #{tpu_custom_call.1} parent=51 // pred_check
          %p868 = pneg %p135
        $region54: #{tpu_custom_call.1} parent=51 // pred_check_branch
          %870 = sbr.rel (%p868) target = $region56
        $region55: #{tpu_custom_call.1} parent=51 // pred_region
          %s871 = sand.u32 %s120, 1
          %s872 = scalar_lea.sflag [#allocation4], %s871
          %s873 = sand.u32 %s120, 1
          %s874 = smul.addr %s873, 32
          %s875 = scalar_lea.vmem [#allocation7], %s874
          %876 = dma.done %s872, 512
        $region56: #{tpu_custom_call.1} parent=51 // pred_fallthru
          _
      $region52: #{tpu_custom_call.1} parent=5 // pred_fallthru
        _
    $region6: #{tpu_custom_call.1} parent=1 // loop_footer
      %s21 = sadd.s32 1, %s17
    $region7: #{tpu_custom_call.1} parent=1 // loop_footer_branch
      %16 = sbr.rel target = $region3
    $region8: #{tpu_custom_call.1} parent=1 // loop_exit
      _
    %877 = vsyncpa [#allocation3], 1
    %s878 = scalar_lea.sflag [#allocation3], 1
    %879 = vsyncpa %s878, 1
    %880 = vsyncpa [#allocation6], 1
    %881 = vsyncpa [#allocation4], 1
    %s882 = scalar_lea.sflag [#allocation4], 1
    %883 = vsyncpa %s882, 1

</llo_original>
